<compile_context>
chip_gen: v6e
topology: v6e:2x2x1
jax: 0.10.0
libtpu: 0.0.40
codegen_flags: <defaults>
</compile_context>

<pallas_src>
import functools

import jax
import jax.numpy as jnp
from jax.experimental import pallas as pl
from jax.experimental.pallas import tpu as pltpu


def _make_positional_table(max_len: int, num_hiddens: int) -> jnp.ndarray:
    """Same construction as the PyTorch __init__ (P has shape (max_len, H))."""
    pos = jnp.arange(max_len, dtype=jnp.float32).reshape(-1, 1)
    denom = jnp.power(
        10000.0,
        jnp.arange(0, num_hiddens, 2, dtype=jnp.float32) / num_hiddens,
    )
    angles = pos / denom  # (max_len, H//2)
    p = jnp.zeros((max_len, num_hiddens), dtype=jnp.float32)
    p = p.at[:, 0::2].set(jnp.sin(angles))
    p = p.at[:, 1::2].set(jnp.cos(angles))
    return p


def _pe_dropout_kernel(seed_ref, x_ref, p_ref, o_ref, *,
                       p_drop: float, rows_per_block: int,
                       inner_cols: int, per_batch_elems: int):
    """One (1, rows_per_block, inner_cols) tile: x + P, then inverted dropout."""
    if p_drop >= 1.0:
        o_ref[...] = jnp.zeros_like(x_ref[...])
        return

    x = x_ref[...].astype(jnp.float32) + p_ref[...].astype(jnp.float32)

    if p_drop > 0.0:
        b = pl.program_id(0)
        rb = pl.program_id(1)
        seed_u = seed_ref[0].astype(jnp.uint32)

        # Global element index (unique across the full (B, S, H) tensor and
        # invariant to the tiling) -> stateless hash PRNG. Only jnp integer
        # ops are used, so this lowers on TPU and in interpret mode alike.
        # TODO(synk): dropout mask is statistically Bernoulli(1-p) with
        # 1/(1-p) rescale but does not bit-match torch.nn.Dropout's RNG.
        row = jax.lax.broadcasted_iota(jnp.int32, x.shape, dimension=1)
        col = jax.lax.broadcasted_iota(jnp.int32, x.shape, dimension=2)
        global_row = rb * rows_per_block + row
        gidx = b * per_batch_elems + global_row * inner_cols + col

        h = gidx.astype(jnp.uint32) ^ (seed_u * jnp.uint32(0x9E3779B9))
        h = (h ^ (h >> 16)) * jnp.uint32(0x7FEB352D)
        h = (h ^ (h >> 15)) * jnp.uint32(0x846CA68B)
        h = h ^ (h >> 16)
        # Low 24 bits = uniform integer in [0, 2^24); keep iff >= p*2^24.
        r24 = (h & jnp.uint32(0x00FFFFFF)).astype(jnp.int32)
        thresh = jnp.int32(int(p_drop * float(1 << 24)))
        keep = r24 >= thresh
        scale = jnp.float32(1.0 / (1.0 - p_drop))
        x = jnp.where(keep, x * scale, jnp.float32(0.0))

    o_ref[...] = x.astype(o_ref.dtype)


def _choose_row_tile(num_rows: int, num_cols: int, dtype_bytes: int = 4,
                     max_block_bytes: int = 2 * 1024 * 1024) -> int:
    """Largest row tile (multiple of 8) dividing num_rows with the block under
    max_block_bytes; falls back to the full extent."""
    max_rows = max(1, max_block_bytes // (num_cols * dtype_bytes))
    if num_rows <= max_rows:
        return num_rows
    t = (max_rows // 8) * 8
    while t >= 8:
        if num_rows % t == 0:
            return t
        t -= 8
    return num_rows


def positional_encoding(x, p_table, seed, *, p_drop: float):
    """x: (B, S, H); p_table: (max_len, H); seed: int32 array of shape (1,)."""
    B, S, H = x.shape
    C = S * H

    # Lane-dense layout: if S*H is a multiple of 128, view each batch slab as
    # (S*H // 128, 128) so every vreg is fully used. The add and dropout are
    # purely elementwise, so this is pure layout plumbing.
    if C % 128 == 0:
        R, L = C // 128, 128
    else:
        R, L = S, H  # fallback: block covers the full (S, H) array dims

    x3 = x.reshape(B, R, L)
    p3 = p_table[:S, :].reshape(1, R, L)

    tR = _choose_row_tile(R, L, dtype_bytes=x.dtype.itemsize)
    n_row_blocks = R // tR

    kernel = functools.partial(
        _pe_dropout_kernel,
        p_drop=float(p_drop),
        rows_per_block=tR,
        inner_cols=L,
        per_batch_elems=R * L,
    )

    cost = pl.CostEstimate(
        flops=3 * B * C,                                   # add + mask + scale
        transcendentals=0,
        bytes_accessed=(2 * B * C + C) * x.dtype.itemsize,  # x in, out, P
    )

    out3 = pl.pallas_call(
        kernel,
        out_shape=jax.ShapeDtypeStruct((B, R, L), x.dtype),
        grid_spec=pltpu.PrefetchScalarGridSpec(
            num_scalar_prefetch=1,                          # seed -> SMEM
            grid=(B, n_row_blocks),
            in_specs=[
                pl.BlockSpec((1, tR, L), lambda b, r, seed_ref: (b, r, 0)),  # x
                pl.BlockSpec((1, tR, L), lambda b, r, seed_ref: (0, r, 0)),  # P
            ],
            out_specs=pl.BlockSpec((1, tR, L), lambda b, r, seed_ref: (b, r, 0)),
        ),
        compiler_params=pltpu.CompilerParams(
            # Every tile is independent (stateless hash PRNG, no carried
            # state) -> both axes parallel; v7x can shard across both TCs.
            dimension_semantics=("parallel", "parallel"),
            vmem_limit_bytes=32 * 1024 * 1024,
        ),
        cost_estimate=cost,
    )(seed, x3, p3)

    return out3.reshape(B, S, H)


if __name__ == "__main__":
    num_hiddens = 32
    dropout_p = 0.1
    max_len = 1000
    batch, seq = 2, 8

    key = jax.random.PRNGKey(0)
    x = jax.random.normal(key, (batch, seq, num_hiddens), dtype=jnp.float32)

    p_table = _make_positional_table(max_len, num_hiddens)
    seed = jnp.array([42], dtype=jnp.int32)

    # Dropout-enabled forward (training mode, matching the PyTorch module).
    out = positional_encoding(x, p_table, seed, p_drop=dropout_p)
    out = jax.block_until_ready(out)
    assert out.shape == (batch, seq, num_hiddens)
    assert out.dtype == jnp.float32
    assert bool(jnp.all(jnp.isfinite(out)))

    # Every output element must be 0 (dropped) or (x + P) / (1 - p) (kept).
    x_pe = x + p_table[None, :seq, :]
    scaled = x_pe / (1.0 - dropout_p)
    is_dropped = jnp.isclose(out, 0.0, atol=1e-6)
    is_kept = jnp.isclose(out, scaled, rtol=1e-5, atol=1e-5)
    assert bool(jnp.all(is_dropped | is_kept))
    assert bool(jnp.any(is_kept))
    assert int(jnp.sum(out == 0.0)) > 0  # dropout actually dropped something

    # Deterministic check with dropout disabled: exact positional-encoding add.
    out_eval = positional_encoding(x, p_table, seed, p_drop=0.0)
    out_eval = jax.block_until_ready(out_eval)
    assert bool(jnp.allclose(out_eval, x_pe, rtol=1e-6, atol=1e-6))

    print("KERNEL_OK")
</pallas_src>

<mosaic_0001>
module attributes {stable_mosaic.version = 11 : i64} {
  func.func @_pe_dropout_kernel(%arg0: i32, %arg1: i32, %arg2: memref<1xi32, #tpu.memory_space<smem>>, %arg3: memref<1x2x128xf32, #tpu.memory_space<vmem>>, %arg4: memref<1x2x128xf32, #tpu.memory_space<vmem>>, %arg5: memref<1x2x128xf32, #tpu.memory_space<vmem>>) attributes {dimension_semantics = [#tpu.dimension_semantics<parallel>, #tpu.dimension_semantics<parallel>], iteration_bounds = array<i64: 2, 1>, scalar_prefetch = 1 : i64, scratch_operands = 0 : i64, tpu.core_type = #tpu.core_type<tc>, window_params = [{transform_indices = @transform_0, window_bounds = array<i64: 1, 2, 128>}, {transform_indices = @transform_1, window_bounds = array<i64: 1, 2, 128>}, {transform_indices = @transform_2, window_bounds = array<i64: 1, 2, 128>}]} {
    %c0 = arith.constant 0 : index
    %c0_0 = arith.constant 0 : index
    %c0_1 = arith.constant 0 : index
    %0 = vector.load %arg3[%c0, %c0_0, %c0_1] : memref<1x2x128xf32, #tpu.memory_space<vmem>>, vector<1x2x128xf32>
    %c0_2 = arith.constant 0 : index
    %c0_3 = arith.constant 0 : index
    %c0_4 = arith.constant 0 : index
    %1 = vector.load %arg4[%c0_2, %c0_3, %c0_4] : memref<1x2x128xf32, #tpu.memory_space<vmem>>, vector<1x2x128xf32>
    %2 = arith.addf %0, %1 : vector<1x2x128xf32>
    %c0_5 = arith.constant 0 : index
    %3 = memref.load %arg2[%c0_5] : memref<1xi32, #tpu.memory_space<smem>>
    %4 = tpu.iota {dimensions = array<i32: 1>} : vector<1x2x128xi32>
    %5 = tpu.iota {dimensions = array<i32: 2>} : vector<1x2x128xi32>
    %c2_i32 = arith.constant 2 : i32
    %6 = arith.muli %arg1, %c2_i32 : i32
    %7 = vector.broadcast %6 : i32 to vector<1x2x128xi32>
    %8 = arith.addi %7, %4 : vector<1x2x128xi32>
    %c256_i32 = arith.constant 256 : i32
    %9 = arith.muli %arg0, %c256_i32 : i32
    %c128_i32 = arith.constant 128 : i32
    %10 = vector.broadcast %c128_i32 : i32 to vector<1x2x128xi32>
    %11 = arith.muli %8, %10 : vector<1x2x128xi32>
    %12 = vector.broadcast %9 : i32 to vector<1x2x128xi32>
    %13 = arith.addi %12, %11 : vector<1x2x128xi32>
    %14 = arith.addi %13, %5 : vector<1x2x128xi32>
    %c-1640531527_i32 = arith.constant -1640531527 : i32
    %15 = arith.muli %3, %c-1640531527_i32 : i32
    %16 = vector.broadcast %15 : i32 to vector<1x2x128xi32>
    %17 = arith.xori %14, %16 : vector<1x2x128xi32>
    %c16_i32 = arith.constant 16 : i32
    %18 = vector.broadcast %c16_i32 : i32 to vector<1x2x128xi32>
    %19 = arith.shrui %17, %18 : vector<1x2x128xi32>
    %20 = arith.xori %17, %19 : vector<1x2x128xi32>
    %c2146121005_i32 = arith.constant 2146121005 : i32
    %21 = vector.broadcast %c2146121005_i32 : i32 to vector<1x2x128xi32>
    %22 = arith.muli %20, %21 : vector<1x2x128xi32>
    %c15_i32 = arith.constant 15 : i32
    %23 = vector.broadcast %c15_i32 : i32 to vector<1x2x128xi32>
    %24 = arith.shrui %22, %23 : vector<1x2x128xi32>
    %25 = arith.xori %22, %24 : vector<1x2x128xi32>
    %c-2073254261_i32 = arith.constant -2073254261 : i32
    %26 = vector.broadcast %c-2073254261_i32 : i32 to vector<1x2x128xi32>
    %27 = arith.muli %25, %26 : vector<1x2x128xi32>
    %c16_i32_6 = arith.constant 16 : i32
    %28 = vector.broadcast %c16_i32_6 : i32 to vector<1x2x128xi32>
    %29 = arith.shrui %27, %28 : vector<1x2x128xi32>
    %30 = arith.xori %27, %29 : vector<1x2x128xi32>
    %c16777215_i32 = arith.constant 16777215 : i32
    %31 = vector.broadcast %c16777215_i32 : i32 to vector<1x2x128xi32>
    %32 = arith.andi %30, %31 : vector<1x2x128xi32>
    %c1677721_i32 = arith.constant 1677721 : i32
    %33 = vector.broadcast %c1677721_i32 : i32 to vector<1x2x128xi32>
    %34 = arith.cmpi sge, %32, %33 : vector<1x2x128xi32>
    %cst = arith.constant 1.11111116 : f32
    %35 = vector.broadcast %cst : f32 to vector<1x2x128xf32>
    %36 = arith.mulf %2, %35 : vector<1x2x128xf32>
    %cst_7 = arith.constant 0.000000e+00 : f32
    %37 = vector.broadcast %cst_7 : f32 to vector<1x2x128xf32>
    %38 = arith.select %34, %36, %37 : vector<1x2x128xi1>, vector<1x2x128xf32>
    %c0_8 = arith.constant 0 : index
    %c0_9 = arith.constant 0 : index
    %c0_10 = arith.constant 0 : index
    %39 = vector.load %arg5[%c0_8, %c0_9, %c0_10] : memref<1x2x128xf32, #tpu.memory_space<vmem>>, vector<1x2x128xf32>
    tpu.vector_store %arg5[%c0_8, %c0_9, %c0_10], %38 {strides = array<i32>} : memref<1x2x128xf32, #tpu.memory_space<vmem>>, vector<1x2x128xf32>,
    return
  }
  func.func @transform_0(%arg0: i32, %arg1: i32, %arg2: memref<1xi32, #tpu.memory_space<smem>>) -> (i32, i32, i32) {
    %c0_i32 = arith.constant 0 : i32
    %c0_i32_0 = arith.constant 0 : i32
    return %arg0, %arg1, %c0_i32 : i32, i32, i32
  }
  func.func @transform_1(%arg0: i32, %arg1: i32, %arg2: memref<1xi32, #tpu.memory_space<smem>>) -> (i32, i32, i32) {
    %c0_i32 = arith.constant 0 : i32
    %c0_i32_0 = arith.constant 0 : i32
    %c0_i32_1 = arith.constant 0 : i32
    return %c0_i32, %arg1, %c0_i32_0 : i32, i32, i32
  }
  func.func @transform_2(%arg0: i32, %arg1: i32, %arg2: memref<1xi32, #tpu.memory_space<smem>>) -> (i32, i32, i32) {
    %c0_i32 = arith.constant 0 : i32
    %c0_i32_0 = arith.constant 0 : i32
    return %arg0, %arg1, %c0_i32 : i32, i32, i32
  }
}

</mosaic_0001>

<llo_original>
// kernel: tpu_custom_call.1
$region0: #{tpu_custom_call.1}
  #allocation0 [shape = 'u32[]', space=smem, size = 0x4, offset = 0x4, fixed_abs, tag = 'smem constant byte address 0x4 - core index']
  #allocation1 [shape = 'u32[144,128]{1,0:T(1,128)}', space=vmem, size = 0x12000, scoped, tag = 'internal scratch']
  #allocation2 [shape = 's32[1]{0}', space=sflag, size = 0x4, scoped, tag = 'scoped memory for tpu_custom_call.1']
  #allocation3 [shape = 's32[1]{0:T(128)S(6)}', space=smem, size = 0x200, scoped, tag = 'prefetched SMEM operand 0']
  %s0 = inlined_call_operand.<no memory space> [shape: s32[1], index: 0, kind: input, shape index: {}]
  %s1 = inlined_call_operand.hbm [shape: f32[2,2,128], index: 1, kind: input, shape index: {}]
  %s2 = inlined_call_operand.vmem [shape: f32[1,2,128], index: 2, kind: input, shape index: {}]
  %s3 = inlined_call_operand.hbm [shape: f32[2,2,128], index: 3, kind: output, shape index: {}]
  %s4 = sld [smem:[#allocation0]]
  $region45: #{tpu_custom_call.1} parent=0
    _
  %s6 = ssub.s32 1, %s4
  %s7 = scalar_select 0, %s6, %s4
  %8 = sst [smem:[#allocation3]] %s0
  $region1: #{tpu_custom_call.1} parent=0
    #allocation4 [shape = 'u8[2048]{0}', space=vmem, size = 0x800, scoped, tag = 'input window, operand 1']
    #allocation5 [shape = 's32[2]{0}', space=sflag, size = 0x8, scoped, tag = 'scoped memory for tpu_custom_call.1']
    #allocation6 [shape = 's32[2]{0}', space=sflag, size = 0x8, scoped, tag = 'scoped memory for tpu_custom_call.1']
    #allocation7 [shape = 'u8[2048]{0}', space=vmem, size = 0x800, scoped, tag = 'output window, operand 0']
    %9 = vsyncpa [#allocation5], 0
    %s10 = scalar_lea.sflag [#allocation5], 1
    %11 = vsyncpa %s10, 0
    %12 = vsyncpa [#allocation6], 0
    %s13 = scalar_lea.sflag [#allocation6], 1
    %14 = vsyncpa %s13, 0
    loop: start=0, step=1, limit=4
    $region2: #{tpu_custom_call.1} parent=1 // loop_pre_header
      _
    $region3: #{tpu_custom_call.1} parent=1 // loop_header
      %s16 = sphi 0, %s20
      %p17 = scmp.ge.s32.totalorder %s16, 4
      %s23 = sphi 0, %s35
      %s24 = sphi 0, %s31
      %s25 = sphi 0, %s23
      %s26 = sphi 0, %s24
      %s27 = sphi 0, %s25
      %s28 = sphi 0, %s26
      %s40 = sphi 0, %s42
      %s43 = sphi 0, %s40
      %s44 = sphi 0, %s43
      %s60 = sphi 0, %s44
      %s66 = sphi 0, %s68
      %s69 = sphi 0, %s66
      %s70 = sphi 0, %s69
      %s86 = sphi 0, %s70
      %s94 = sphi 0, %s96
      %s97 = sphi 0, %s94
      %s98 = sphi 0, %s97
      %s114 = sphi 0, %s98
    $region4: #{tpu_custom_call.1} parent=1 // loop_header_branch
      %19 = sbr.rel (%p17) target = $region8
    $region5: #{tpu_custom_call.1} parent=1 // loop_body
      %s21 = ssub.s32 %s16, 1
      %s22 = ssub.s32 %s16, 2
      %s29 = sadd.s32 1, %s24
      %p30 = scmp.ge.s32.totalorder %s29, 1
      %s31 = scalar_select %p30, 0, %s29
      %s32 = sadd.s32 1, %s23
      %s33 = scalar_select %p30, %s32, %s23
      %p34 = scmp.ge.s32.totalorder %s33, 2
      %s35 = scalar_select %p34, 0, %s33
      %s36 = ssub.s32 %s23, %s35
      %s37 = ssub.s32 %s24, %s31
      %s38 = sor.u32 %s36, %s37
      %p39 = scmp.eq.s32.totalorder %s38, 0
      %s41 = sadd.s32 %s40, 1
      %s42 = scalar_select %p39, %s40, %s41
      %p45 = pneg %p39
      %p46 = scmp.eq.s32.totalorder %s16, 1
      %p47 = por %p45, %p46
      %p48 = scmp.ne.s32.totalorder %s40, %s43
      %p49 = scmp.eq.s32.totalorder %s16, 0
      %p50 = por %p48, %p49
      %p51 = scmp.ne.s32.totalorder %s40, %s43
      %p52 = scmp.eq.s32.totalorder %s21, 1
      %p53 = por %p51, %p52
      %p54 = scmp.ne.s32.totalorder %s43, %s44
      %p55 = scmp.eq.s32.totalorder %s21, 0
      %p56 = por %p54, %p55
      %p57 = scmp.ne.s32.totalorder %s43, %s44
      %p58 = scmp.eq.s32.totalorder %s22, 1
      %p59 = por %p57, %p58
      %p61 = scmp.ne.s32.totalorder %s44, %s60
      %p62 = scmp.eq.s32.totalorder %s22, 0
      %p63 = por %p61, %p62
      %s64 = ssub.s32 %s24, %s31
      %p65 = scmp.eq.s32.totalorder %s64, 0
      %s67 = sadd.s32 %s66, 1
      %s68 = scalar_select %p65, %s66, %s67
      %p71 = pneg %p65
      %p72 = scmp.eq.s32.totalorder %s16, 1
      %p73 = por %p71, %p72
      %p74 = scmp.ne.s32.totalorder %s66, %s69
      %p75 = scmp.eq.s32.totalorder %s16, 0
      %p76 = por %p74, %p75
      %p77 = scmp.ne.s32.totalorder %s66, %s69
      %p78 = scmp.eq.s32.totalorder %s21, 1
      %p79 = por %p77, %p78
      %p80 = scmp.ne.s32.totalorder %s69, %s70
      %p81 = scmp.eq.s32.totalorder %s21, 0
      %p82 = por %p80, %p81
      %p83 = scmp.ne.s32.totalorder %s69, %s70
      %p84 = scmp.eq.s32.totalorder %s22, 1
      %p85 = por %p83, %p84
      %p87 = scmp.ne.s32.totalorder %s70, %s86
      %p88 = scmp.eq.s32.totalorder %s22, 0
      %p89 = por %p87, %p88
      %s90 = ssub.s32 %s23, %s35
      %s91 = ssub.s32 %s24, %s31
      %s92 = sor.u32 %s90, %s91
      %p93 = scmp.eq.s32.totalorder %s92, 0
      %s95 = sadd.s32 %s94, 1
      %s96 = scalar_select %p93, %s94, %s95
      %p99 = pneg %p93
      %p100 = scmp.eq.s32.totalorder %s16, 1
      %p101 = por %p99, %p100
      %p102 = scmp.ne.s32.totalorder %s94, %s97
      %p103 = scmp.eq.s32.totalorder %s16, 0
      %p104 = por %p102, %p103
      %p105 = scmp.ne.s32.totalorder %s94, %s97
      %p106 = scmp.eq.s32.totalorder %s21, 1
      %p107 = por %p105, %p106
      %p108 = scmp.ne.s32.totalorder %s97, %s98
      %p109 = scmp.eq.s32.totalorder %s21, 0
      %p110 = por %p108, %p109
      %p111 = scmp.ne.s32.totalorder %s97, %s98
      %p112 = scmp.eq.s32.totalorder %s22, 1
      %p113 = por %p111, %p112
      %p115 = scmp.ne.s32.totalorder %s98, %s114
      %p116 = scmp.eq.s32.totalorder %s22, 0
      %p117 = por %p115, %p116
      %p118 = scmp.le.s32.totalorder 1, %s16
      %p119 = scmp.lt.s32.totalorder %s16, 3
      %p120 = pnand %p118, %p119
      %p121 = pneg %p120
      // Predicated region
      $region9: #{tpu_custom_call.1} parent=5 // pred_check
        _
      $region10: #{tpu_custom_call.1} parent=5 // pred_check_branch
        %123 = sbr.rel (%p120) target = $region12
      $region11: #{tpu_custom_call.1} parent=5 // pred_region
        %s124 = ssub.s32 %s16, 1
        // Predicated region
        $region13: #{tpu_custom_call.1} parent=11 // pred_check
          %p125 = pneg %p82
        $region14: #{tpu_custom_call.1} parent=11 // pred_check_branch
          %127 = sbr.rel (%p125) target = $region16
        $region15: #{tpu_custom_call.1} parent=11 // pred_region
          %p128 = scmp.lt.s32.totalorder %s26, 0
          %s129 = scalar_select %p128, %s26, 0
          %s130 = smul.addr %s129, 2
          %s131 = scalar_lea.vmem %s2, %s130
        $region16: #{tpu_custom_call.1} parent=11 // pred_fallthru
          _
      $region12: #{tpu_custom_call.1} parent=5 // pred_fallthru
        _
      %p132 = scmp.lt.s32.totalorder %s16, 2
      // Predicated region
      $region17: #{tpu_custom_call.1} parent=5 // pred_check
        %p133 = pneg %p132
      $region18: #{tpu_custom_call.1} parent=5 // pred_check_branch
        %135 = sbr.rel (%p133) target = $region20
      $region19: #{tpu_custom_call.1} parent=5 // pred_region
        // Predicated region
        $region21: #{tpu_custom_call.1} parent=19 // pred_check
          %p136 = pneg %p50
        $region22: #{tpu_custom_call.1} parent=19 // pred_check_branch
          %138 = sbr.rel (%p136) target = $region24
        $region23: #{tpu_custom_call.1} parent=19 // pred_region
          %s139 = sand.u32 %s40, 1
          %s140 = scalar_lea.sflag [#allocation5], %s139
          %s141 = sand.u32 %s40, 1
          %s142 = smul.addr %s141, 2
          %s143 = scalar_lea.vmem [#allocation4], %s142
          %s145 = ssub.s32 32, 32
          %146 = vsyncadd %s140, %s145
          %s147 = sadd.s32 %s24, %s23
          %s148 = smul.addr %s147, 32
          %s149 = scalar_lea.hbm %s1, %s148
          %s151 = sshll.u32 %s143, 4
          %s152 = int_to_ptr.vmem [resolvable:$true] %s151
          %154 = dma.hbm_to_vmem [thread:$0]  %s149, 32, %s152, %s140
        $region24: #{tpu_custom_call.1} parent=19 // pred_fallthru
          _
      $region20: #{tpu_custom_call.1} parent=5 // pred_fallthru
        _
      %p155 = scmp.le.s32.totalorder 1, %s16
      %p156 = scmp.lt.s32.totalorder %s16, 3
      %p157 = pnand %p155, %p156
      %p158 = pneg %p157
      // Predicated region
      $region25: #{tpu_custom_call.1} parent=5 // pred_check
        _
      $region26: #{tpu_custom_call.1} parent=5 // pred_check_branch
        %160 = sbr.rel (%p157) target = $region28
      $region27: #{tpu_custom_call.1} parent=5 // pred_region
        %s161 = ssub.s32 %s16, 1
        %s162 = sand.u32 %s43, 1
        %s163 = scalar_lea.sflag [#allocation5], %s162
        %s164 = sand.u32 %s43, 1
        %s165 = smul.addr %s164, 2
        %s166 = scalar_lea.vmem [#allocation4], %s165
        // Predicated region
        $region29: #{tpu_custom_call.1} parent=27 // pred_check
          %p167 = pneg %p56
        $region30: #{tpu_custom_call.1} parent=27 // pred_check_branch
          %169 = sbr.rel (%p167) target = $region32
        $region31: #{tpu_custom_call.1} parent=27 // pred_region
          %170 = dma.done %s163, 32
        $region32: #{tpu_custom_call.1} parent=27 // pred_fallthru
          _
        %s171 = sand.u32 %s43, 1
        %s172 = scalar_lea.sflag [#allocation5], %s171
        %s173 = sand.u32 %s43, 1
        %s174 = smul.addr %s173, 2
        %s175 = scalar_lea.vmem [#allocation4], %s174
        %p176 = pneg %p56
        %p177 = pneg %p53
        %p178 = scmp.lt.s32.totalorder %s26, 0
        %s179 = scalar_select %p178, %s26, 0
        %s180 = smul.addr %s179, 2
        %s181 = scalar_lea.vmem %s2, %s180
        %p182 = pneg %p82
        %p183 = pneg %p79
        %p184 = pneg %p110
        %p185 = pneg %p107
        %s186 = sand.u32 %s97, 1
        %s187 = scalar_lea.sflag [#allocation6], %s186
        %s188 = sand.u32 %s97, 1
        %s189 = smul.addr %s188, 2
        %s190 = scalar_lea.vmem [#allocation7], %s189
        %p191 = scmp.lt.s32.totalorder %s26, 0
        %s192 = scalar_select %p191, %s26, 0
        %s193 = smul.addr %s192, 2
        %s194 = scalar_lea.vmem %s2, %s193
        %v195 = vld [vmem:[%s166] sm:$0x3]
        %v196 = vld [vmem:[%s194] sm:$0x3]
        %v197 = vadd.f32 %v195, %v196
        %s198 = sld [smem:[#allocation3]]
        %v199 = vlaneseq
        %v200 = vshrl.u32 %v199, 7
        %v201 = vlaneseq
        %v202 = vand.u32 %v201, 127
        %s203 = smul.u32 %s26, 2
        %v204 = vstv %s203
        %v205 = vadd.s32 %v204, %v200
        %s206 = smul.u32 %s25, 256
        %v207 = vmul.u32 %v205, 128
        %v208 = vstv %s206
        %v209 = vadd.s32 %v208, %v207
        %v210 = vadd.s32 %v209, %v202
        %s211 = smul.u32 %s198, 2654435769
        %v212 = vstv %s211
        %v213 = vxor.u32 %v210, %v212
        %v214 = vshrl.u32 %v213, 16
        %v215 = vxor.u32 %v213, %v214
        %v216 = vmul.u32 %v215, 2146121005
        %v217 = vshrl.u32 %v216, 15
        %v218 = vxor.u32 %v216, %v217
        %v219 = vmul.u32 %v218, 2221713035
        %v220 = vshrl.u32 %v219, 16
        %v221 = vxor.u32 %v219, %v220
        %v222 = vand.u32 %v221, 16777215
        %vm223 = vcmp.ge.s32.totalorder %v222, 1677721
        %v224 = vmul.f32 %v197, 1.1111112
        %v225 = vsel %vm223, %v224, 0.0
        %226 = vst [vmem:[%s190] sm:$0x3] %v225
        %s227 = sand.u32 %s97, 1
        %s228 = scalar_lea.sflag [#allocation6], %s227
        %s229 = sand.u32 %s97, 1
        %s230 = smul.addr %s229, 2
        %s231 = scalar_lea.vmem [#allocation7], %s230
        // Predicated region
        $region33: #{tpu_custom_call.1} parent=27 // pred_check
          %p232 = pneg %p107
        $region34: #{tpu_custom_call.1} parent=27 // pred_check_branch
          %234 = sbr.rel (%p232) target = $region36
        $region35: #{tpu_custom_call.1} parent=27 // pred_region
          %s236 = ssub.s32 32, 32
          %237 = vsyncadd %s228, %s236
          %s238 = sadd.s32 %s26, %s25
          %s239 = smul.addr %s238, 32
          %s240 = scalar_lea.hbm %s3, %s239
          %s242 = sshll.u32 %s231, 4
          %s243 = int_to_ptr.vmem [resolvable:$true] %s242
          %245 = dma.vmem_to_hbm [thread:$0]  %s243, 32, %s240, %s228
        $region36: #{tpu_custom_call.1} parent=27 // pred_fallthru
          _
      $region28: #{tpu_custom_call.1} parent=5 // pred_fallthru
        _
      %p246 = scmp.le.s32.totalorder 2, %s16
      // Predicated region
      $region37: #{tpu_custom_call.1} parent=5 // pred_check
        %p247 = pneg %p246
      $region38: #{tpu_custom_call.1} parent=5 // pred_check_branch
        %249 = sbr.rel (%p247) target = $region40
      $region39: #{tpu_custom_call.1} parent=5 // pred_region
        %s250 = ssub.s32 %s16, 2
        // Predicated region
        $region41: #{tpu_custom_call.1} parent=39 // pred_check
          %p251 = pneg %p113
        $region42: #{tpu_custom_call.1} parent=39 // pred_check_branch
          %253 = sbr.rel (%p251) target = $region44
        $region43: #{tpu_custom_call.1} parent=39 // pred_region
          %s254 = sand.u32 %s98, 1
          %s255 = scalar_lea.sflag [#allocation6], %s254
          %s256 = sand.u32 %s98, 1
          %s257 = smul.addr %s256, 2
          %s258 = scalar_lea.vmem [#allocation7], %s257
          %259 = dma.done %s255, 32
        $region44: #{tpu_custom_call.1} parent=39 // pred_fallthru
          _
      $region40: #{tpu_custom_call.1} parent=5 // pred_fallthru
        _
    $region6: #{tpu_custom_call.1} parent=1 // loop_footer
      %s20 = sadd.s32 1, %s16
    $region7: #{tpu_custom_call.1} parent=1 // loop_footer_branch
      %15 = sbr.rel target = $region3
    $region8: #{tpu_custom_call.1} parent=1 // loop_exit
      _
    %260 = vsyncpa [#allocation5], 1
    %s261 = scalar_lea.sflag [#allocation5], 1
    %262 = vsyncpa %s261, 1
    %263 = vsyncpa [#allocation6], 1
    %s264 = scalar_lea.sflag [#allocation6], 1
    %265 = vsyncpa %s264, 1

</llo_original>
